<compile_context>
chip_gen: v7x
topology: tpu7x:2x2x1
jax: 0.10.0
libtpu: 0.0.40
codegen_flags: <defaults>
</compile_context>

<pallas_src>
import functools

import jax
import jax.numpy as jnp
from jax import lax
from jax.experimental import pallas as pl
from jax.experimental.pallas import tpu as pltpu

LANES = 128
SUBLANES = 8


def _mae_sum_kernel(pred_ref, gold_ref, out_ref, *,
                    tile_rows, tiles_per_part, valid_rows, n_full_tiles,
                    needs_mask):
    part = pl.program_id(0)
    step = pl.program_id(1)

    @pl.when(step == 0)
    def _init():
        out_ref[...] = jnp.zeros_like(out_ref)

    # Upcast in-kernel (vregs) so HBM traffic stays at the native dtype width.
    diff = jnp.abs(pred_ref[...].astype(jnp.float32)
                   - gold_ref[...].astype(jnp.float32))

    def _accumulate(d):
        # Sublane-aligned reshape (layout-preserving) + leading-axis sum:
        # pure VPU vreg adds, no per-step XLU reduce, no SMEM scalar dep.
        out_ref[...] += jnp.sum(
            d.reshape(tile_rows // SUBLANES, SUBLANES, LANES), axis=0)

    if not needs_mask:
        _accumulate(diff)
    else:
        # Only tiles at / past the end of the real row range need masking:
        # the partial last tile and any clamped duplicate tile from the
        # ceil-split across parts.  Interior tiles skip the mask at runtime.
        logical_tile = part * tiles_per_part + step
        is_edge = logical_tile >= n_full_tiles

        @pl.when(jnp.logical_not(is_edge))
        def _interior():
            _accumulate(diff)

        @pl.when(is_edge)
        def _edge():
            # Row mask as a SELECT (garbage/NaN behind the mask cannot
            # propagate through jnp.where).  int32 row indices only overflow
            # past ~2^31 rows (~2.7e11 elements) -- not a practical concern.
            row0 = logical_tile * tile_rows
            rows = lax.broadcasted_iota(jnp.int32, (tile_rows, LANES), 0) + row0
            _accumulate(jnp.where(rows < valid_rows, diff, 0.0))


def _device_kind():
    try:
        return jax.devices()[0].device_kind.lower()
    except Exception:
        return ""


def _generation_params():
    """(target bytes per input block, scoped-VMEM limit, multi-TC chip?)."""
    kind = _device_kind()
    if ("v5e" in kind) or ("v5 lite" in kind) or ("v5litepod" in kind):
        return 2 << 20, 64 << 20, False          # v5e: 16 MiB scoped default
    if "v6" in kind:
        return 4 << 20, 64 << 20, False          # v6e: 128 MiB physical VMEM
    if "v7" in kind:
        return 4 << 20, 48 << 20, True           # v7x: 64 MiB physical, 2 TCs
    return 2 << 20, 32 << 20, False              # unknown: stay conservative


def mae_loss(pred, gold, raw=None, col_names=None):
    """Pallas equivalent of MAELoss.forward: mean(|pred - gold|) in f32.

    `raw` and `col_names` are accepted for API parity but unused, matching the
    PyTorch module.
    """
    assert pred.shape == gold.shape, "pred/gold must have identical shapes"
    n = int(pred.size)
    if n == 0:
        return jnp.float32(jnp.nan)  # matches torch mean over an empty tensor

    p = jnp.ravel(pred)
    g = jnp.ravel(gold)

    # Packed-sublane alignment: 8 rows for 32-bit dtypes, 16 for bf16, 32 for
    # int8/fp8.  The kernel consumes the aligned prefix; the tiny tail is
    # reduced wrapper-side (no full-array concatenate/padding copy).
    packing = max(1, 4 // p.dtype.itemsize, 4 // g.dtype.itemsize)
    sub_mult = SUBLANES * packing                  # row-count alignment
    sub_elems = sub_mult * LANES                   # element-count alignment
    n_main = (n // sub_elems) * sub_elems

    tail_sum = jnp.float32(0.0)
    if n_main < n:
        tail_sum = jnp.sum(jnp.abs(p[n_main:].astype(jnp.float32)
                                   - g[n_main:].astype(jnp.float32)))
    if n_main == 0:
        # Tiny input: the whole thing fits in the wrapper-side tail reduction.
        return tail_sum / jnp.float32(n)

    m = n_main // LANES
    p2 = p[:n_main].reshape(m, LANES)              # native dtype
    g2 = g[:n_main].reshape(m, LANES)

    target_bytes, vmem_limit, multi_tc = _generation_params()
    blk_item = max(p2.dtype.itemsize, g2.dtype.itemsize)
    target_rows = max(sub_mult,
                      (target_bytes // (LANES * blk_item)) // sub_mult * sub_mult)
    tile_rows = min(m, target_rows)                # multiple of sub_mult

    n_row_tiles = pl.cdiv(m, tile_rows)
    # 2-way split only on multi-TC chips (v7x); on single-TC v5e/v6e it would
    # only add a clamped duplicate-tile DMA and always-on masking.
    num_parts = 2 if (multi_tc and n_row_tiles >= 2) else 1
    tiles_per_part = pl.cdiv(n_row_tiles, num_parts)
    covered_rows = num_parts * tiles_per_part * tile_rows
    needs_mask = covered_rows != m
    n_full_tiles = m // tile_rows

    kernel = functools.partial(
        _mae_sum_kernel,
        tile_rows=tile_rows,
        tiles_per_part=tiles_per_part,
        valid_rows=m,
        n_full_tiles=n_full_tiles,
        needs_mask=needs_mask,
    )

    def in_map(part, step):
        # Clamp so a DMA never targets a block index past the array; the
        # in-kernel select zeroes any contribution from a clamped duplicate.
        return (jnp.minimum(part * tiles_per_part + step, n_row_tiles - 1), 0)

    bytes_accessed = (p2.size * p2.dtype.itemsize
                      + g2.size * g2.dtype.itemsize
                      + num_parts * SUBLANES * LANES * 4)

    partials = pl.pallas_call(
        kernel,
        out_shape=jax.ShapeDtypeStruct((num_parts * SUBLANES, LANES),
                                       jnp.float32),
        grid=(num_parts, tiles_per_part),
        in_specs=[
            pl.BlockSpec((tile_rows, LANES), in_map),
            pl.BlockSpec((tile_rows, LANES), in_map),
        ],
        # Constant block index along the step axis -> output block stays
        # resident in VMEM and doubles as the accumulator.
        out_specs=pl.BlockSpec((SUBLANES, LANES), lambda part, step: (part, 0)),
        compiler_params=pltpu.CompilerParams(
            dimension_semantics=("parallel", "arbitrary"),
            vmem_limit_bytes=vmem_limit),
        cost_estimate=pl.CostEstimate(
            flops=3 * n, transcendentals=0, bytes_accessed=bytes_accessed),
    )(p2, g2)

    # One cheap cross-lane reduce over the tiny partials block, add the tail,
    # then exact division by the TRUE element count (masked rows contribute 0).
    return (jnp.sum(partials) + tail_sum) / jnp.float32(n)


if __name__ == "__main__":
    key = jax.random.PRNGKey(0)
    k1, k2, k3, k4, k5, k6, k7 = jax.random.split(key, 7)

    # Small shapes consistent with the forward: pred/gold (batch, seq, feat).
    # 2*8*134 = 2144 elements -> exercises the kernel path (2048-elem aligned
    # prefix) plus the wrapper-side tail reduction (96 elements).
    batch, seq, feat = 2, 8, 134
    pred = jax.random.normal(k1, (batch, seq, feat), dtype=jnp.float32)
    gold = jax.random.normal(k2, (batch, seq, feat), dtype=jnp.float32)
    raw = jax.random.normal(k3, (batch, seq, feat), dtype=jnp.float32)  # unused
    col_names = ["Patv"]                                                # unused

    loss = mae_loss(pred, gold, raw, col_names)
    jax.block_until_ready(loss)
    ref = jnp.mean(jnp.abs(pred - gold))
    assert jnp.allclose(loss, ref, rtol=1e-6, atol=1e-6), (loss, ref)

    # Aligned case (332800 elements, single tile, no mask).
    pred_b = jax.random.normal(k4, (26, 100, 128), dtype=jnp.float32)
    gold_b = jax.random.normal(k5, (26, 100, 128), dtype=jnp.float32)
    loss_b = mae_loss(pred_b, gold_b, None, None)
    jax.block_until_ready(loss_b)
    ref_b = jnp.mean(jnp.abs(pred_b - gold_b))
    assert jnp.allclose(loss_b, ref_b, rtol=1e-5, atol=1e-5), (loss_b, ref_b)

    # Large aligned case (2.46M elements, 19200 rows): multi-tile grid with a
    # partial edge tile -> exercises the runtime-gated mask branch.
    pred_c = jax.random.normal(k6, (64, 300, 128), dtype=jnp.float32)
    gold_c = jax.random.normal(k7, (64, 300, 128), dtype=jnp.float32)
    loss_c = mae_loss(pred_c, gold_c, None, None)
    jax.block_until_ready(loss_c)
    ref_c = jnp.mean(jnp.abs(pred_c - gold_c))
    assert jnp.allclose(loss_c, ref_c, rtol=1e-4, atol=1e-5), (loss_c, ref_c)

    print("KERNEL_OK")
</pallas_src>

<mosaic_0001>
module attributes {stable_mosaic.version = 11 : i64} {
  func.func @_mae_sum_kernel(%arg0: i32, %arg1: i32, %arg2: memref<16x128xf32, #tpu.memory_space<vmem>>, %arg3: memref<16x128xf32, #tpu.memory_space<vmem>>, %arg4: memref<8x128xf32, #tpu.memory_space<vmem>>) attributes {dimension_semantics = [#tpu.dimension_semantics<parallel>, #tpu.dimension_semantics<arbitrary>], iteration_bounds = array<i64: 1, 1>, scalar_prefetch = 0 : i64, scratch_operands = 0 : i64, tpu.core_type = #tpu.core_type<tc>, window_params = [{transform_indices = @transform_0, window_bounds = array<i64: 16, 128>}, {transform_indices = @transform_1, window_bounds = array<i64: 16, 128>}, {transform_indices = @transform_2, window_bounds = array<i64: 8, 128>}]} {
    %c0_i32 = arith.constant 0 : i32
    %0 = arith.cmpi eq, %arg1, %c0_i32 : i32
    %1 = arith.extui %0 : i1 to i32
    %c0_i32_0 = arith.constant 0 : i32
    %2 = arith.cmpi ne, %1, %c0_i32_0 : i32
    scf.if %2 {
      %cst_8 = arith.constant 0.000000e+00 : f32
      %12 = vector.broadcast %cst_8 : f32 to vector<8x128xf32>
      %c0_9 = arith.constant 0 : index
      %c0_10 = arith.constant 0 : index
      %13 = vector.load %arg4[%c0_9, %c0_10] : memref<8x128xf32, #tpu.memory_space<vmem>>, vector<8x128xf32>
      tpu.vector_store %arg4[%c0_9, %c0_10], %12 {strides = array<i32>} : memref<8x128xf32, #tpu.memory_space<vmem>>, vector<8x128xf32>,
    } else {
    }
    %c0 = arith.constant 0 : index
    %c0_1 = arith.constant 0 : index
    %3 = vector.load %arg2[%c0, %c0_1] : memref<16x128xf32, #tpu.memory_space<vmem>>, vector<16x128xf32>
    %c0_2 = arith.constant 0 : index
    %c0_3 = arith.constant 0 : index
    %4 = vector.load %arg3[%c0_2, %c0_3] : memref<16x128xf32, #tpu.memory_space<vmem>>, vector<16x128xf32>
    %5 = arith.subf %3, %4 : vector<16x128xf32>
    %6 = math.absf %5 : vector<16x128xf32>
    %c0_4 = arith.constant 0 : index
    %c0_5 = arith.constant 0 : index
    %7 = vector.load %arg4[%c0_4, %c0_5] : memref<8x128xf32, #tpu.memory_space<vmem>>, vector<8x128xf32>
    %8 = vector.shape_cast %6 : vector<16x128xf32> to vector<2x8x128xf32>
    %cst = arith.constant dense<0.000000e+00> : vector<8x128xf32>
    %9 = vector.multi_reduction <add>, %8, %cst [0] : vector<2x8x128xf32> to vector<8x128xf32>
    %10 = arith.addf %7, %9 : vector<8x128xf32>
    %c0_6 = arith.constant 0 : index
    %c0_7 = arith.constant 0 : index
    %11 = vector.load %arg4[%c0_6, %c0_7] : memref<8x128xf32, #tpu.memory_space<vmem>>, vector<8x128xf32>
    tpu.vector_store %arg4[%c0_6, %c0_7], %10 {strides = array<i32>} : memref<8x128xf32, #tpu.memory_space<vmem>>, vector<8x128xf32>,
    return
  }
  func.func @transform_0(%arg0: i32, %arg1: i32) -> (i32, i32) {
    %c1_i32 = arith.constant 1 : i32
    %0 = arith.muli %arg0, %c1_i32 : i32
    %1 = arith.addi %0, %arg1 : i32
    %c0_i32 = arith.constant 0 : i32
    %2 = arith.minsi %1, %c0_i32 : i32
    %c0_i32_0 = arith.constant 0 : i32
    %c0_i32_1 = arith.constant 0 : i32
    return %2, %c0_i32_0 : i32, i32
  }
  func.func @transform_1(%arg0: i32, %arg1: i32) -> (i32, i32) {
    %c1_i32 = arith.constant 1 : i32
    %0 = arith.muli %arg0, %c1_i32 : i32
    %1 = arith.addi %0, %arg1 : i32
    %c0_i32 = arith.constant 0 : i32
    %2 = arith.minsi %1, %c0_i32 : i32
    %c0_i32_0 = arith.constant 0 : i32
    %c0_i32_1 = arith.constant 0 : i32
    return %2, %c0_i32_0 : i32, i32
  }
  func.func @transform_2(%arg0: i32, %arg1: i32) -> (i32, i32) {
    %c0_i32 = arith.constant 0 : i32
    %c0_i32_0 = arith.constant 0 : i32
    return %arg0, %c0_i32 : i32, i32
  }
}

</mosaic_0001>

<llo_original>
// kernel: tpu_custom_call.1
$region0: #{tpu_custom_call.1}
  #allocation0 [shape = 'u32[]', space=smem, size = 0x4, offset = 0x4, fixed_abs, tag = 'smem constant byte address 0x4 - core index']
  #allocation1 [shape = 'u32[144,128]{1,0:T(1,128)}', space=vmem, size = 0x12000, scoped, tag = 'internal scratch']
  %s0 = inlined_call_operand.hbm [shape: f32[16,128], index: 0, kind: input, shape index: {}]
  %s1 = inlined_call_operand.hbm [shape: f32[16,128], index: 1, kind: input, shape index: {}]
  %s2 = inlined_call_operand.hbm [shape: f32[8,128], index: 2, kind: output, shape index: {}]
  %s3 = sld [smem:[#allocation0]]
  $region30: #{tpu_custom_call.1} parent=0
    _
  %s5 = ssub.s32 1, %s3
  %s6 = scalar_select 0, %s5, %s3
  $region1: #{tpu_custom_call.1} parent=0
    #allocation2 [shape = 'u8[8192]{0}', space=vmem, size = 0x2000, scoped, tag = 'input window, operand 0, single buffered']
    #allocation3 [shape = 's32[1]{0}', space=sflag, size = 0x4, scoped, tag = 'scoped memory for tpu_custom_call.1']
    #allocation4 [shape = 's32[1]{0}', space=sflag, size = 0x4, scoped, tag = 'scoped memory for tpu_custom_call.1']
    #allocation5 [shape = 'u8[8192]{0}', space=vmem, size = 0x2000, scoped, tag = 'input window, operand 1, single buffered']
    #allocation6 [shape = 's32[1]{0}', space=sflag, size = 0x4, scoped, tag = 'scoped memory for tpu_custom_call.1']
    #allocation7 [shape = 'u8[4096]{0}', space=vmem, size = 0x1000, scoped, tag = 'output window, operand 0, single buffered']
    %7 = vsyncpa [#allocation3], 0
    %8 = vsyncpa [#allocation6], 0
    %9 = vsyncpa [#allocation4], 0
    // Predicated region
    $region2: #{tpu_custom_call.1} parent=1 // pred_check
      _
    $region3: #{tpu_custom_call.1} parent=1 // pred_check_branch
      %11 = sbr.rel (0) target = $region5
    $region4: #{tpu_custom_call.1} parent=1 // pred_region
      %s12 = sadd.s32 0, 0
      %p13 = scmp.lt.s32.totalorder %s12, 0
      %s14 = scalar_select %p13, %s12, 0
      %s15 = smul.u32 2, %s14
      %s17 = ssub.s32 256, 256
      %18 = vsyncadd [#allocation3], %s17
      %s19 = smul.addr %s15, 128
      %s20 = scalar_lea.hbm %s0, %s19
      %s21 = sshll.u32 [#allocation2], 4
      %s22 = int_to_ptr.vmem [resolvable:$true] %s21
      %27 = dma.hbm_to_vmem [thread:$0]  %s20, 256, %s22, [#allocation3], 128, 128, 8
    $region5: #{tpu_custom_call.1} parent=1 // pred_fallthru
      _
    // Predicated region
    $region6: #{tpu_custom_call.1} parent=1 // pred_check
      _
    $region7: #{tpu_custom_call.1} parent=1 // pred_check_branch
      %29 = sbr.rel (0) target = $region9
    $region8: #{tpu_custom_call.1} parent=1 // pred_region
      %s30 = sadd.s32 0, 0
      %p31 = scmp.lt.s32.totalorder %s30, 0
      %s32 = scalar_select %p31, %s30, 0
      %s33 = smul.u32 2, %s32
      %s35 = ssub.s32 256, 256
      %36 = vsyncadd [#allocation6], %s35
      %s37 = smul.addr %s33, 128
      %s38 = scalar_lea.hbm %s1, %s37
      %s39 = sshll.u32 [#allocation5], 4
      %s40 = int_to_ptr.vmem [resolvable:$true] %s39
      %45 = dma.hbm_to_vmem [thread:$0]  %s38, 256, %s40, [#allocation6], 128, 128, 8
    $region9: #{tpu_custom_call.1} parent=1 // pred_fallthru
      _
    // Predicated region
    $region10: #{tpu_custom_call.1} parent=1 // pred_check
      _
    $region11: #{tpu_custom_call.1} parent=1 // pred_check_branch
      %47 = sbr.rel (0) target = $region13
    $region12: #{tpu_custom_call.1} parent=1 // pred_region
      %48 = dma.done [#allocation3], 256
    $region13: #{tpu_custom_call.1} parent=1 // pred_fallthru
      _
    // Predicated region
    $region14: #{tpu_custom_call.1} parent=1 // pred_check
      _
    $region15: #{tpu_custom_call.1} parent=1 // pred_check_branch
      %50 = sbr.rel (0) target = $region17
    $region16: #{tpu_custom_call.1} parent=1 // pred_region
      %51 = dma.done [#allocation6], 256
    $region17: #{tpu_custom_call.1} parent=1 // pred_fallthru
      _
    %s52 = sadd.s32 0, 0
    %p53 = scmp.lt.s32.totalorder %s52, 0
    %s54 = scalar_select %p53, %s52, 0
    %s55 = smul.u32 2, %s54
    %s56 = sadd.s32 0, 0
    %p57 = scmp.lt.s32.totalorder %s56, 0
    %s58 = scalar_select %p57, %s56, 0
    %s59 = smul.u32 2, %s58
    %p60 = scmp.eq.s32.totalorder 0, 0
    // Predicated region
    $region18: #{tpu_custom_call.1} parent=1 // pred_check
      %p61 = pneg %p60
    $region19: #{tpu_custom_call.1} parent=1 // pred_check_branch
      %63 = sbr.rel (%p61) target = $region21
    $region20: #{tpu_custom_call.1} parent=1 // pred_region
      %64 = vst [vmem:[#allocation7] sm:$0xff] 0.0
    $region21: #{tpu_custom_call.1} parent=1 // pred_fallthru
      _
    %v65 = vld [vmem:[#allocation2] sm:$0xff]
    %v66 = vld [vmem:[#allocation2 + $0x8] sm:$0xff]
    %v67 = vld [vmem:[#allocation5] sm:$0xff]
    %v68 = vld [vmem:[#allocation5 + $0x8] sm:$0xff]
    %v69 = vsub.f32 %v65, %v67
    %v70 = vsub.f32 %v66, %v68
    %v71 = vand.u32 2147483647, %v69
    %v72 = vand.u32 2147483647, %v70
    %v73 = vld [vmem:[#allocation7] sm:$0xff]
    %v74 = vadd.f32 %v71, %v72
    %v75 = vadd.f32 %v73, %v74
    %76 = vst [vmem:[#allocation7] sm:$0xff] %v75
    // Predicated region
    $region22: #{tpu_custom_call.1} parent=1 // pred_check
      _
    $region23: #{tpu_custom_call.1} parent=1 // pred_check_branch
      %78 = sbr.rel (0) target = $region25
    $region24: #{tpu_custom_call.1} parent=1 // pred_region
      %s80 = ssub.s32 128, 128
      %81 = vsyncadd [#allocation4], %s80
      %s83 = sshll.u32 [#allocation7], 4
      %s84 = int_to_ptr.vmem [resolvable:$true] %s83
      %86 = dma.vmem_to_hbm [thread:$0]  %s84, 128, %s2, [#allocation4]
    $region25: #{tpu_custom_call.1} parent=1 // pred_fallthru
      _
    // Predicated region
    $region26: #{tpu_custom_call.1} parent=1 // pred_check
      _
    $region27: #{tpu_custom_call.1} parent=1 // pred_check_branch
      %88 = sbr.rel (0) target = $region29
    $region28: #{tpu_custom_call.1} parent=1 // pred_region
      %89 = dma.done [#allocation4], 128
    $region29: #{tpu_custom_call.1} parent=1 // pred_fallthru
      _
    %90 = vsyncpa [#allocation3], 1
    %91 = vsyncpa [#allocation6], 1
    %92 = vsyncpa [#allocation4], 1

</llo_original>
